<compile_context>
chip_gen: v6e
topology: v6e:2x2x1
jax: 0.10.0
libtpu: 0.0.40
codegen_flags: <defaults>
</compile_context>

<pallas_src>
import jax
import jax.numpy as jnp
from jax.experimental import pallas as pl
from jax.experimental.pallas import tpu as pltpu


def _add_scalar_kernel(added_ref, x_ref, o_ref):
    # added_ref: (1, 1) scalar in SMEM; x_ref/o_ref: full array in VMEM
    # (o aliases x, elementwise in-place add is safe).
    o_ref[...] = x_ref[...] + added_ref[0, 0]


def _lane_dense_2d(x):
    """Reshape to a 2-D view whose last dim is 128-wide when possible, so
    stores lower to unmasked vst instead of masked partial stores."""
    n = x.size
    if n % 128 == 0:
        return x.reshape(n // 128, 128)
    # Fallback: single row (still a legal full-dim block, just masked stores).
    return x.reshape(1, n)


@jax.jit
def model_mock_forward(x, added_number=1):
    """Pallas implementation of ModelMock.forward: x + added_number."""
    # Scalar lives in SMEM so different values of added_number do NOT retrace.
    added_arr = jnp.asarray(added_number, dtype=x.dtype).reshape(1, 1)
    x2d = _lane_dense_2d(x)

    out2d = pl.pallas_call(
        _add_scalar_kernel,
        out_shape=jax.ShapeDtypeStruct(x2d.shape, x2d.dtype),
        in_specs=[
            pl.BlockSpec(memory_space=pltpu.MemorySpace.SMEM),  # added scalar
            pl.BlockSpec(memory_space=pltpu.MemorySpace.VMEM),  # x (one block)
        ],
        out_specs=pl.BlockSpec(memory_space=pltpu.MemorySpace.VMEM),
        # Reuse the lane-dense input buffer for the output.
        input_output_aliases={1: 0},
    )(added_arr, x2d)

    return out2d.reshape(x.shape)


def build_unused_params(n=1, key=jax.random.PRNGKey(42)):
    """Deterministically build the (unused-in-forward) linear_relu_stack params.

    Mirrors __init__:
      Linear(32, 1024), ReLU,
      [Linear(1024*i, 1024*(i+1)), ReLU for i in 1..n-1],
      Linear(1024*n, 512), ReLU, Linear(512, 10)
    These parameters are never touched by forward(); kept only for fidelity.
    """
    dims = [32, 1024]
    for i in range(1, n):
        dims.append(1024 * (i + 1))
    dims += [512, 10]
    params = []
    for d_in, d_out in zip(dims[:-1], dims[1:]):
        key, wk, bk = jax.random.split(key, 3)
        bound = 1.0 / (d_in ** 0.5)
        w = jax.random.uniform(wk, (d_out, d_in), jnp.float32, -bound, bound)
        b = jax.random.uniform(bk, (d_out,), jnp.float32, -bound, bound)
        params.append((w, b))
    return params


if __name__ == "__main__":
    n = 1
    added_number = 1

    # Built only to mirror __init__; unused by forward().
    _ = build_unused_params(n)

    key = jax.random.PRNGKey(0)
    # Input feature dim of 32 matches the (unused) first Linear(32, 1024).
    x = jax.random.normal(key, (8, 32), dtype=jnp.float32)

    out = model_mock_forward(x, added_number)
    out = jax.block_until_ready(out)

    expected = x + added_number
    assert out.shape == x.shape and out.dtype == x.dtype
    assert jnp.allclose(out, expected, atol=1e-6), "mismatch vs reference"

    print("KERNEL_OK")
</pallas_src>

<mosaic_0001>
module attributes {stable_mosaic.version = 11 : i64} {
  func.func @_add_scalar_kernel(%arg0: memref<1x1xf32, #tpu.memory_space<smem>>, %arg1: memref<2x128xf32, #tpu.memory_space<vmem>>, %arg2: memref<2x128xf32, #tpu.memory_space<vmem>>) attributes {dimension_semantics = [], scalar_prefetch = 0 : i64, scratch_operands = 0 : i64, tpu.core_type = #tpu.core_type<tc>} {
    %c0 = arith.constant 0 : index
    %c0_0 = arith.constant 0 : index
    %0 = vector.load %arg1[%c0, %c0_0] : memref<2x128xf32, #tpu.memory_space<vmem>>, vector<2x128xf32>
    %c0_1 = arith.constant 0 : index
    %c0_2 = arith.constant 0 : index
    %1 = memref.load %arg0[%c0_1, %c0_2] : memref<1x1xf32, #tpu.memory_space<smem>>
    %2 = vector.broadcast %1 : f32 to vector<2x128xf32>
    %3 = arith.addf %0, %2 : vector<2x128xf32>
    %c0_3 = arith.constant 0 : index
    %c0_4 = arith.constant 0 : index
    %4 = vector.load %arg2[%c0_3, %c0_4] : memref<2x128xf32, #tpu.memory_space<vmem>>, vector<2x128xf32>
    tpu.vector_store %arg2[%c0_3, %c0_4], %3 {strides = array<i32>} : memref<2x128xf32, #tpu.memory_space<vmem>>, vector<2x128xf32>,
    return
  }
}

</mosaic_0001>

<llo_original>
// kernel: model_mock_forward.1
$region0: #{model_mock_forward.1}
  #allocation0 [shape = 'u32[]', space=smem, size = 0x4, offset = 0x4, fixed_abs, tag = 'smem constant byte address 0x4 - core index']
  #allocation1 [shape = 'u32[144,128]{1,0:T(1,128)}', space=vmem, size = 0x12000, scoped, tag = 'internal scratch']
  #allocation2 [shape = 'f32[1,1]{1,0:T(1,128)S(6)}', space=smem, size = 0x200, scoped, tag = 'scoped memory for model_mock_forward.1']
  %s0 = inlined_call_operand.<no memory space> [shape: f32[1,1], index: 0, kind: input, shape index: {}]
  %s1 = inlined_call_operand.vmem [shape: f32[2,128], index: 1, kind: input, shape index: {}, may-alias: {1,2}]
  %s2 = inlined_call_operand.vmem [shape: f32[2,128], index: 2, kind: output, shape index: {}, may-alias: {1,2}]
  %s3 = sld [smem:[#allocation0]]
  $region18: #{model_mock_forward.1} parent=0
    _
  %s5 = ssub.s32 1, %s3
  %s6 = scalar_select 0, %s5, %s3
  %7 = sst [smem:[#allocation2]] %s0
  // Predicated region
  $region2: #{model_mock_forward.1} parent=0 // pred_check
    _
  $region3: #{model_mock_forward.1} parent=0 // pred_check_branch
    %9 = sbr.rel (0) target = $region5
  $region4: #{model_mock_forward.1} parent=0 // pred_region
    _
  $region5: #{model_mock_forward.1} parent=0 // pred_fallthru
    _
  // Predicated region
  $region6: #{model_mock_forward.1} parent=0 // pred_check
    _
  $region7: #{model_mock_forward.1} parent=0 // pred_check_branch
    %11 = sbr.rel (0) target = $region9
  $region8: #{model_mock_forward.1} parent=0 // pred_region
    _
  $region9: #{model_mock_forward.1} parent=0 // pred_fallthru
    _
  %v12 = vld [vmem:[%s1] sm:$0x3]
  %s13 = sld [smem:[#allocation2]]
  %v14 = vstv %s13
  %v15 = vadd.f32 %v12, %v14
  %16 = vst [vmem:[%s2] sm:$0x3] %v15
  // Predicated region
  $region10: #{model_mock_forward.1} parent=0 // pred_check
    _
  $region11: #{model_mock_forward.1} parent=0 // pred_check_branch
    %18 = sbr.rel (0) target = $region13
  $region12: #{model_mock_forward.1} parent=0 // pred_region
    _
  $region13: #{model_mock_forward.1} parent=0 // pred_fallthru
    _
  // Predicated region
  $region14: #{model_mock_forward.1} parent=0 // pred_check
    _
  $region15: #{model_mock_forward.1} parent=0 // pred_check_branch
    %20 = sbr.rel (0) target = $region17
  $region16: #{model_mock_forward.1} parent=0 // pred_region
    _
  $region17: #{model_mock_forward.1} parent=0 // pred_fallthru
    _

</llo_original>
